<compile_context>
chip_gen: v6e
topology: v6e:2x2x1
jax: 0.10.0
libtpu: 0.0.40
codegen_flags: <defaults>
</compile_context>

<pallas_src>
from functools import partial
import math

import jax
import jax.numpy as jnp
from jax import lax
from jax.experimental import pallas as pl
from jax.experimental.pallas import tpu as pltpu


def _pick_tile(dim, candidates):
    """Largest candidate that evenly divides `dim`; fall back to the full dim."""
    for c in candidates:
        if c <= dim and dim % c == 0:
            return c
    return dim


# ----------------------------------------------------------------------------
# Tiled linear projection: y = x @ W + b
# ----------------------------------------------------------------------------
def _linear_kernel(x_ref, w_ref, b_ref, o_ref):
    o_ref[...] = (
        jnp.dot(x_ref[...], w_ref[...], preferred_element_type=jnp.float32)
        + b_ref[...]
    ).astype(o_ref.dtype)


def linear(x2d, w, b):
    """x2d: (N, d_in), w: (d_in, d_out), b: (1, d_out) -> (N, d_out)."""
    N, d_in = x2d.shape
    d_out = w.shape[1]
    TM = _pick_tile(N, (512, 256, 128, 64, 32, 16, 8))
    TN = _pick_tile(d_out, (256, 128))
    grid = (N // TM, d_out // TN)
    return pl.pallas_call(
        _linear_kernel,
        out_shape=jax.ShapeDtypeStruct((N, d_out), x2d.dtype),
        grid=grid,
        in_specs=[
            pl.BlockSpec((TM, d_in), lambda i, j: (i, 0)),
            pl.BlockSpec((d_in, TN), lambda i, j: (0, j)),
            pl.BlockSpec((1, TN), lambda i, j: (0, j)),
        ],
        out_specs=pl.BlockSpec((TM, TN), lambda i, j: (i, j)),
        compiler_params=pltpu.CompilerParams(
            dimension_semantics=("parallel", "parallel"),
            vmem_limit_bytes=32 * 1024 * 1024,
        ),
    )(x2d, w, b)


# ----------------------------------------------------------------------------
# Flash-style multi-head attention (online softmax, KV streamed, heads batched)
# ----------------------------------------------------------------------------
def _attention_kernel(q_ref, k_ref, v_ref, o_ref, m_ref, l_ref, acc_ref,
                      *, n_heads, d_k, d_v, scale):
    kv = pl.program_id(2)

    @pl.when(kv == 0)
    def _():
        m_ref[...] = jnp.full_like(m_ref, -jnp.inf)
        l_ref[...] = jnp.zeros_like(l_ref)
        acc_ref[...] = jnp.zeros_like(acc_ref)

    # Fold the softmax scale into Q (touches L*dk elems instead of L*S scores).
    q = q_ref[...] * scale          # (TQ, H*dk)
    k = k_ref[...]                  # (TS, H*dk)
    v = v_ref[...]                  # (TS, H*dv)

    # Contract the last dims directly (A @ B^T) -- no explicit k transpose.
    nt_dims = (((1,), (1,)), ((), ()))

    for h in range(n_heads):        # all heads of this (batch, q-tile) per step
        q_h = q[:, h * d_k:(h + 1) * d_k]            # (TQ, dk)
        k_h = k[:, h * d_k:(h + 1) * d_k]            # (TS, dk)
        v_h = v[:, h * d_v:(h + 1) * d_v]            # (TS, dv)

        s = lax.dot_general(q_h, k_h, nt_dims,
                            preferred_element_type=jnp.float32)  # (TQ, TS)

        m_prev = m_ref[h]                            # (TQ, 1)
        m_new = jnp.maximum(m_prev, jnp.max(s, axis=-1, keepdims=True))
        alpha = jnp.exp(m_prev - m_new)
        p = jnp.exp(s - m_new)                       # (TQ, TS)

        l_ref[h] = alpha * l_ref[h] + jnp.sum(p, axis=-1, keepdims=True)
        acc_ref[h] = alpha * acc_ref[h] + jnp.dot(
            p.astype(v_h.dtype), v_h, preferred_element_type=jnp.float32)
        m_ref[h] = m_new

    @pl.when(kv == pl.num_programs(2) - 1)
    def _():
        # Assemble one lane-dense (TQ, H*dv) slab and store it in a single write.
        parts = [acc_ref[h] * pl.reciprocal(l_ref[h], approx=True)
                 for h in range(n_heads)]
        o_ref[...] = jnp.concatenate(parts, axis=-1).astype(o_ref.dtype)


def full_attention(q, k, v, *, n_heads, d_k, d_v, scale):
    """q: (B, L, H*dk), k: (B, S, H*dk), v: (B, S, H*dv) -> (B, L, H*dv)."""
    B, L, _ = q.shape
    S = k.shape[1]
    TQ = _pick_tile(L, (256, 128, 64, 32, 16, 8))
    TS = _pick_tile(S, (512, 256, 128, 64, 32, 16, 8))
    grid = (B, L // TQ, S // TS)

    kern = partial(_attention_kernel, n_heads=n_heads, d_k=d_k, d_v=d_v,
                   scale=scale)
    return pl.pallas_call(
        kern,
        out_shape=jax.ShapeDtypeStruct((B, L, n_heads * d_v), q.dtype),
        grid=grid,
        in_specs=[
            pl.BlockSpec((None, TQ, n_heads * d_k), lambda b, i, j: (b, i, 0)),
            pl.BlockSpec((None, TS, n_heads * d_k), lambda b, i, j: (b, j, 0)),
            pl.BlockSpec((None, TS, n_heads * d_v), lambda b, i, j: (b, j, 0)),
        ],
        out_specs=pl.BlockSpec((None, TQ, n_heads * d_v),
                               lambda b, i, j: (b, i, 0)),
        scratch_shapes=[
            pltpu.VMEM((n_heads, TQ, 1), jnp.float32),    # running max m
            pltpu.VMEM((n_heads, TQ, 1), jnp.float32),    # running sum l
            pltpu.VMEM((n_heads, TQ, d_v), jnp.float32),  # output accumulator
        ],
        compiler_params=pltpu.CompilerParams(
            dimension_semantics=("parallel", "parallel", "arbitrary"),
            vmem_limit_bytes=32 * 1024 * 1024,
        ),
    )(q, k, v)


# ----------------------------------------------------------------------------
# AttentionLayer forward (glue in plain JAX, hot paths in Pallas)
# ----------------------------------------------------------------------------
def init_params(key, d_model, n_heads, d_keys=None, d_values=None):
    d_keys = d_keys or d_model // n_heads
    d_values = d_values or d_model // n_heads
    ks = jax.random.split(key, 8)
    scale_in = 1.0 / math.sqrt(d_model)
    scale_out = 1.0 / math.sqrt(d_values * n_heads)

    def lin(kw, kb, d_in, d_out, s):
        # weights stored pre-transposed: (d_in, d_out); bias as (1, d_out)
        w = jax.random.uniform(kw, (d_in, d_out), jnp.float32, -s, s)
        b = jax.random.uniform(kb, (1, d_out), jnp.float32, -s, s)
        return w, b

    wq, bq = lin(ks[0], ks[1], d_model, d_keys * n_heads, scale_in)
    wk, bk = lin(ks[2], ks[3], d_model, d_keys * n_heads, scale_in)
    wv, bv = lin(ks[4], ks[5], d_model, d_values * n_heads, scale_in)
    wo, bo = lin(ks[6], ks[7], d_values * n_heads, d_model, scale_out)
    return dict(
        wq=wq, bq=bq, wk=wk, bk=bk, wv=wv, bv=bv, wo=wo, bo=bo,
        n_heads=n_heads, d_keys=d_keys, d_values=d_values,
    )


def attention_layer_forward(params, queries, keys, values, attn_mask=None):
    B, L, d_model = queries.shape
    _, S, _ = keys.shape
    H = params["n_heads"]
    dk = params["d_keys"]
    dv = params["d_values"]

    # Projections: (B*?, d_model) -> (B, ?, H*d).  Reshapes here are free
    # (contiguous merges/splits); no head transposes are performed.
    q = linear(queries.reshape(B * L, d_model), params["wq"], params["bq"])
    k = linear(keys.reshape(B * S, d_model), params["wk"], params["bk"])
    v = linear(values.reshape(B * S, d_model), params["wv"], params["bv"])
    q = q.reshape(B, L, H * dk)
    k = k.reshape(B, S, H * dk)
    v = v.reshape(B, S, H * dv)

    scale = 1.0 / math.sqrt(dk)
    out = full_attention(q, k, v, n_heads=H, d_k=dk, d_v=dv, scale=scale)

    out = linear(out.reshape(B * L, H * dv), params["wo"], params["bo"])
    return out.reshape(B, L, d_model), None  # attn weights not returned


# ----------------------------------------------------------------------------
if __name__ == "__main__":
    B, L, S = 2, 8, 8
    d_model, n_heads = 32, 4

    key = jax.random.PRNGKey(0)
    kp, kq, kk, kv = jax.random.split(key, 4)

    params = init_params(kp, d_model, n_heads)
    queries = jax.random.normal(kq, (B, L, d_model), jnp.float32)
    keys = jax.random.normal(kk, (B, S, d_model), jnp.float32)
    values = jax.random.normal(kv, (B, S, d_model), jnp.float32)

    out, attn = attention_layer_forward(params, queries, keys, values, attn_mask=None)
    out = jax.block_until_ready(out)
    assert out.shape == (B, L, d_model), out.shape
    print("KERNEL_OK")
</pallas_src>

<mosaic_0001>
module attributes {stable_mosaic.version = 11 : i64} {
  func.func @_linear_kernel(%arg0: i32, %arg1: i32, %arg2: memref<16x32xf32, #tpu.memory_space<vmem>>, %arg3: memref<32x32xf32, #tpu.memory_space<vmem>>, %arg4: memref<1x32xf32, #tpu.memory_space<vmem>>, %arg5: memref<16x32xf32, #tpu.memory_space<vmem>>) attributes {dimension_semantics = [#tpu.dimension_semantics<parallel>, #tpu.dimension_semantics<parallel>], iteration_bounds = array<i64: 1, 1>, scalar_prefetch = 0 : i64, scratch_operands = 0 : i64, tpu.core_type = #tpu.core_type<tc>, window_params = [{transform_indices = @transform_0, window_bounds = array<i64: 16, 32>}, {transform_indices = @transform_1, window_bounds = array<i64: 32, 32>}, {transform_indices = @transform_2, window_bounds = array<i64: 1, 32>}, {transform_indices = @transform_3, window_bounds = array<i64: 16, 32>}]} {
    %c0 = arith.constant 0 : index
    %c0_0 = arith.constant 0 : index
    %0 = vector.load %arg2[%c0, %c0_0] : memref<16x32xf32, #tpu.memory_space<vmem>>, vector<16x32xf32>
    %c0_1 = arith.constant 0 : index
    %c0_2 = arith.constant 0 : index
    %1 = vector.load %arg3[%c0_1, %c0_2] : memref<32x32xf32, #tpu.memory_space<vmem>>, vector<32x32xf32>
    %cst = arith.constant dense<0.000000e+00> : vector<16x32xf32>
    %2 = tpu.matmul %0, %1, %cst {dimension_numbers = #tpu.dot_dimension_numbers<[1], [0], [0], [1], [0, 0, 1, 1], [], []>} : vector<16x32xf32>, vector<32x32xf32>, vector<16x32xf32> -> vector<16x32xf32>
    %c0_3 = arith.constant 0 : index
    %c0_4 = arith.constant 0 : index
    %3 = vector.load %arg4[%c0_3, %c0_4] : memref<1x32xf32, #tpu.memory_space<vmem>>, vector<1x32xf32>
    %4 = vector.broadcast %3 : vector<1x32xf32> to vector<16x32xf32>
    %5 = arith.addf %2, %4 : vector<16x32xf32>
    %c0_5 = arith.constant 0 : index
    %c0_6 = arith.constant 0 : index
    %6 = vector.load %arg5[%c0_5, %c0_6] : memref<16x32xf32, #tpu.memory_space<vmem>>, vector<16x32xf32>
    tpu.vector_store %arg5[%c0_5, %c0_6], %5 {strides = array<i32>} : memref<16x32xf32, #tpu.memory_space<vmem>>, vector<16x32xf32>,
    return
  }
  func.func @transform_0(%arg0: i32, %arg1: i32) -> (i32, i32) {
    %c0_i32 = arith.constant 0 : i32
    %c0_i32_0 = arith.constant 0 : i32
    return %arg0, %c0_i32 : i32, i32
  }
  func.func @transform_1(%arg0: i32, %arg1: i32) -> (i32, i32) {
    %c0_i32 = arith.constant 0 : i32
    %c0_i32_0 = arith.constant 0 : i32
    return %c0_i32, %arg1 : i32, i32
  }
  func.func @transform_2(%arg0: i32, %arg1: i32) -> (i32, i32) {
    %c0_i32 = arith.constant 0 : i32
    %c0_i32_0 = arith.constant 0 : i32
    return %c0_i32, %arg1 : i32, i32
  }
  func.func @transform_3(%arg0: i32, %arg1: i32) -> (i32, i32) {
    %c0_i32 = arith.constant 0 : i32
    return %arg0, %arg1 : i32, i32
  }
}

</mosaic_0001>

<llo_original>
// kernel: tpu_custom_call.1
$region0: #{tpu_custom_call.1}
  #allocation0 [shape = 'u32[]', space=smem, size = 0x4, offset = 0x4, fixed_abs, tag = 'smem constant byte address 0x4 - core index']
  #allocation1 [shape = 'u32[144,128]{1,0:T(1,128)}', space=vmem, size = 0x12000, scoped, tag = 'internal scratch']
  %s0 = inlined_call_operand.hbm [shape: f32[16,32], index: 0, kind: input, shape index: {}]
  %s1 = inlined_call_operand.hbm [shape: f32[32,32], index: 1, kind: input, shape index: {}]
  %s2 = inlined_call_operand.vmem [shape: f32[1,32], index: 2, kind: input, shape index: {}]
  %s3 = inlined_call_operand.hbm [shape: f32[16,32], index: 3, kind: output, shape index: {}]
  %s4 = sld [smem:[#allocation0]]
  $region30: #{tpu_custom_call.1} parent=0
    _
  %s6 = ssub.s32 1, %s4
  %s7 = scalar_select 0, %s6, %s4
  $region1: #{tpu_custom_call.1} parent=0
    #allocation2 [shape = 'u8[8192]{0}', space=vmem, size = 0x2000, scoped, tag = 'input window, operand 0, single buffered']
    #allocation3 [shape = 's32[1]{0}', space=sflag, size = 0x4, scoped, tag = 'scoped memory for tpu_custom_call.1']
    #allocation4 [shape = 's32[1]{0}', space=sflag, size = 0x4, scoped, tag = 'scoped memory for tpu_custom_call.1']
    #allocation5 [shape = 'u8[16384]{0}', space=vmem, size = 0x4000, scoped, tag = 'input window, operand 1, single buffered']
    #allocation6 [shape = 's32[1]{0}', space=sflag, size = 0x4, scoped, tag = 'scoped memory for tpu_custom_call.1']
    #allocation7 [shape = 'u8[8192]{0}', space=vmem, size = 0x2000, scoped, tag = 'output window, operand 0, single buffered']
    %8 = vsyncpa [#allocation3], 0
    %9 = vsyncpa [#allocation6], 0
    %10 = vsyncpa [#allocation4], 0
    // Predicated region
    $region2: #{tpu_custom_call.1} parent=1 // pred_check
      _
    $region3: #{tpu_custom_call.1} parent=1 // pred_check_branch
      %12 = sbr.rel (0) target = $region5
    $region4: #{tpu_custom_call.1} parent=1 // pred_region
      %s14 = ssub.s32 256, 256
      %15 = vsyncadd [#allocation3], %s14
      %s16 = sshll.u32 [#allocation2], 4
      %s17 = int_to_ptr.vmem [resolvable:$true] %s16
      %22 = dma.hbm_to_vmem [thread:$0]  %s0, 256, %s17, [#allocation3], 128, 128, 8
    $region5: #{tpu_custom_call.1} parent=1 // pred_fallthru
      _
    // Predicated region
    $region6: #{tpu_custom_call.1} parent=1 // pred_check
      _
    $region7: #{tpu_custom_call.1} parent=1 // pred_check_branch
      %24 = sbr.rel (0) target = $region9
    $region8: #{tpu_custom_call.1} parent=1 // pred_region
      %s26 = ssub.s32 512, 512
      %27 = vsyncadd [#allocation6], %s26
      %s28 = sshll.u32 [#allocation5], 4
      %s29 = int_to_ptr.vmem [resolvable:$true] %s28
      %34 = dma.hbm_to_vmem [thread:$0]  %s1, 512, %s29, [#allocation6], 128, 128, 8
    $region9: #{tpu_custom_call.1} parent=1 // pred_fallthru
      _
    // Predicated region
    $region10: #{tpu_custom_call.1} parent=1 // pred_check
      _
    $region11: #{tpu_custom_call.1} parent=1 // pred_check_branch
      %36 = sbr.rel (0) target = $region13
    $region12: #{tpu_custom_call.1} parent=1 // pred_region
      _
    $region13: #{tpu_custom_call.1} parent=1 // pred_fallthru
      _
    // Predicated region
    $region14: #{tpu_custom_call.1} parent=1 // pred_check
      _
    $region15: #{tpu_custom_call.1} parent=1 // pred_check_branch
      %38 = sbr.rel (0) target = $region17
    $region16: #{tpu_custom_call.1} parent=1 // pred_region
      %39 = dma.done [#allocation3], 256
    $region17: #{tpu_custom_call.1} parent=1 // pred_fallthru
      _
    // Predicated region
    $region18: #{tpu_custom_call.1} parent=1 // pred_check
      _
    $region19: #{tpu_custom_call.1} parent=1 // pred_check_branch
      %41 = sbr.rel (0) target = $region21
    $region20: #{tpu_custom_call.1} parent=1 // pred_region
      %42 = dma.done [#allocation6], 512
    $region21: #{tpu_custom_call.1} parent=1 // pred_fallthru
      _
    %v43 = vld [vmem:[#allocation2] sm:$0xff]
    %v44 = vld [vmem:[#allocation2 + $0x8] sm:$0xff]
    %v45 = vld [vmem:[#allocation5] sm:$0xff]
    %v46 = vld [vmem:[#allocation5 + $0x8] sm:$0xff]
    %v47 = vld [vmem:[#allocation5 + $0x10] sm:$0xff]
    %v48 = vld [vmem:[#allocation5 + $0x18] sm:$0xff]
    %v49 = vld [vmem:[%s2] sm:$0x1]
    %v51 = vlaneseq
    %v52 = vshrl.u32 %v51, 7
    %v53 = vsub.s32 0, %v52
    %v54 = vrot.slane %v49, %v53
    %vm56 = vcmask 261120
    %v58 = vsel %vm56, %v43, 0
    %v61 = vsel %vm56, %v44, 0
    %63 = vmatprep.subr.mxu0 0.0
    %64 = vmatpush1.msra.mxu0 0.0
    %65 = vmatprep.subr.mxu0 0.0
    %66 = vmatpush1.msra.mxu0 0.0
    %67 = vmatprep.subr.mxu0 0.0
    %68 = vmatpush1.msra.mxu0 0.0
    %69 = vmatprep.subr.mxu0 0.0
    %70 = vmatpush1.msra.mxu0 0.0
    %71 = vmatprep.subr.mxu0 0.0
    %72 = vmatpush1.msra.mxu0 0.0
    %73 = vmatprep.subr.mxu0 0.0
    %74 = vmatpush1.msra.mxu0 0.0
    %75 = vmatprep.subr.mxu0 0.0
    %76 = vmatpush1.msra.mxu0 0.0
    %77 = vmatprep.subr.mxu0 0.0
    %78 = vmatpush1.msra.mxu0 0.0
    %79 = vmatprep.subr.mxu0 0.0
    %80 = vmatpush1.msra.mxu0 0.0
    %81 = vmatprep.subr.mxu0 0.0
    %82 = vmatpush1.msra.mxu0 0.0
    %83 = vmatprep.subr.mxu0 0.0
    %84 = vmatpush1.msra.mxu0 0.0
    %85 = vmatprep.subr.mxu0 0.0
    %86 = vmatpush1.msra.mxu0 0.0
    %87 = vmatprep.subr.mxu0 0.0
    %88 = vmatpush1.msra.mxu0 %v48
    %89 = vmatprep.subr.mxu0 0.0
    %90 = vmatpush1.msra.mxu0 %v47
    %91 = vmatprep.subr.mxu0 0.0
    %92 = vmatpush1.msra.mxu0 %v46
    %93 = vmatprep.subr.mxu0 0.0
    %94 = vmatpush1.msra.mxu0 %v45
    %95 = vmatprep.subr.mxu0 0.0
    %96 = vmatpush2.msra.mxu0 0.0
    %97 = vmatprep.subr.mxu0 0.0
    %98 = vmatpush2.msra.mxu0 0.0
    %99 = vmatprep.subr.mxu0 0.0
    %100 = vmatpush2.msra.mxu0 0.0
    %101 = vmatprep.subr.mxu0 0.0
    %102 = vmatpush2.msra.mxu0 0.0
    %103 = vmatprep.subr.mxu0 0.0
    %104 = vmatpush2.msra.mxu0 0.0
    %105 = vmatprep.subr.mxu0 0.0
    %106 = vmatpush2.msra.mxu0 0.0
    %107 = vmatprep.subr.mxu0 0.0
    %108 = vmatpush2.msra.mxu0 0.0
    %109 = vmatprep.subr.mxu0 0.0
    %110 = vmatpush2.msra.mxu0 0.0
    %111 = vmatprep.subr.mxu0 0.0
    %112 = vmatpush2.msra.mxu0 0.0
    %113 = vmatprep.subr.mxu0 0.0
    %114 = vmatpush2.msra.mxu0 0.0
    %115 = vmatprep.subr.mxu0 0.0
    %116 = vmatpush2.msra.mxu0 0.0
    %117 = vmatprep.subr.mxu0 0.0
    %118 = vmatpush2.msra.mxu0 0.0
    %119 = vmatprep.subr.mxu0 0.0
    %120 = vmatpush2.msra.mxu0 0.0
    %121 = vmatprep.subr.mxu0 0.0
    %122 = vmatpush2.msra.mxu0 0.0
    %123 = vmatprep.subr.mxu0 0.0
    %124 = vmatpush2.msra.mxu0 0.0
    %125 = vmatprep.subr.mxu0 0.0
    %126 = vmatpush2.msra.mxu0 0.0
    %127 = vmatprep.mubr.f32.mxu0 0.0
    %128 = vmatmul.mubr.f32.gmra.mxu0 %v58
    %v129 = vpop.f32.mrf.mxu0
    %v130 = vadd.f32 %v54, %v129
    %v131 = vpop.f32.mrf.mxu0
    %132 = vmatprep.mubr.f32.mxu0 0.0
    %133 = vmatmul.mubr.f32.gmra.mxu0 %v61
    %v134 = vpop.f32.mrf.mxu0
    %v135 = vadd.f32 %v54, %v134
    %v136 = vpop.f32.mrf.mxu0
    %137 = vdwg.mxu0
    %138 = vst.msk [vmem:[#allocation7] sm:$0xff] %vm56, %v130
    %139 = vst.msk [vmem:[#allocation7 + $0x8] sm:$0xff] %vm56, %v135
    // Predicated region
    $region22: #{tpu_custom_call.1} parent=1 // pred_check
      _
    $region23: #{tpu_custom_call.1} parent=1 // pred_check_branch
      %141 = sbr.rel (0) target = $region25
    $region24: #{tpu_custom_call.1} parent=1 // pred_region
      %s143 = ssub.s32 256, 256
      %144 = vsyncadd [#allocation4], %s143
      %s145 = sshll.u32 [#allocation7], 4
      %s146 = int_to_ptr.vmem [resolvable:$true] %s145
      %151 = dma.vmem_to_hbm [thread:$0]  %s146, 256, %s3, [#allocation4], 128, 128, 8
    $region25: #{tpu_custom_call.1} parent=1 // pred_fallthru
      _
    // Predicated region
    $region26: #{tpu_custom_call.1} parent=1 // pred_check
      _
    $region27: #{tpu_custom_call.1} parent=1 // pred_check_branch
      %153 = sbr.rel (0) target = $region29
    $region28: #{tpu_custom_call.1} parent=1 // pred_region
      %154 = dma.done [#allocation4], 256
    $region29: #{tpu_custom_call.1} parent=1 // pred_fallthru
      _
    %155 = vsyncpa [#allocation3], 1
    %156 = vsyncpa [#allocation6], 1
    %157 = vsyncpa [#allocation4], 1

</llo_original>
